<compile_context>
chip_gen: v7x
topology: tpu7x:2x2x1
jax: 0.10.0
libtpu: 0.0.40
codegen_flags: <defaults>
</compile_context>

<pallas_src>
import functools

import jax
import jax.numpy as jnp
from jax.experimental import pallas as pl
from jax.experimental.pallas import tpu as pltpu

BN_EPS = 1e-5
LANE = 128
SUBLANE = 8


def _stats_kernel(feat_ref, partial_ref, *, n_rows, block_rows):
    """Per batch-tile partial statistics: row 0 = column sums, row 1 = centered sum of
    squares (centered on the tile mean).  Boundary rows (beyond n_rows) are masked."""
    i = pl.program_id(0)
    rows_left = n_rows - i * block_rows                           # traced scalar
    row_ids = jax.lax.broadcasted_iota(jnp.int32, feat_ref.shape, 0)
    valid = row_ids < rows_left

    x = jnp.where(valid, feat_ref[...].astype(jnp.float32), 0.0)  # garbage rows -> 0
    count = jnp.minimum(rows_left, block_rows).astype(jnp.float32)

    s1 = jnp.sum(x, axis=0, keepdims=True)                        # (1, D_in)
    tile_mean = s1 * (1.0 / count)
    xc = jnp.where(valid, x - tile_mean, 0.0)                     # centered, masked
    m2 = jnp.sum(xc * xc, axis=0, keepdims=True)                  # (1, D_in)

    partial_ref[...] = jnp.concatenate([s1, m2], axis=0)[None]    # (1, 2, D_in)


def _apply_kernel(x_ref, w_ref, b_ref, o_ref, *, precision, activation):
    """out_tile = x_tile @ W_scaled_tile^T + bias_tile.  Pure MXU + one broadcast add;
    all BN folding was hoisted to the wrapper."""
    acc = jax.lax.dot_general(
        x_ref[...], w_ref[...],
        (((1,), (1,)), ((), ())),                 # contract last dims: trans_b on the MXU
        preferred_element_type=jnp.float32,
        precision=precision)
    y = acc + b_ref[...]                          # (tb, tn) + (1, tn) broadcast, f32
    if activation is not None:                    # module default: None -> identity
        y = activation(y)
    o_ref[...] = y.astype(o_ref.dtype)


def price_aware_forward(feat, gamma, beta, weight, *, batch_tile=512, dout_tile=512,
                        precision=None, activation=None, eps=BN_EPS):
    """feat: (N, D_in); gamma/beta: (D_in,); weight: (D_out, D_in) (PyTorch Linear layout)."""
    n, d_in = feat.shape
    d_out, d_in_w = weight.shape
    assert d_in_w == d_in, "weight must be (D_out, D_in)"
    out_dtype = feat.dtype

    # ---- tiling: no input padding / no output slicing copies -------------------------
    # Boundary tiles are masked (pass 1) or discarded by Pallas' clamped writes (pass 2).
    # When D_in / D_out are stored pre-padded to 128 multiples (common case), all loads
    # and stores are lane-dense; for the small demo shapes they are simply full-dim blocks.
    tb = n if n <= batch_tile else max(SUBLANE, (batch_tile // SUBLANE) * SUBLANE)
    tn = d_out if d_out <= dout_tile else max(LANE, (dout_tile // LANE) * LANE)

    itemsize = jnp.dtype(out_dtype).itemsize

    def p2_bytes(tb_, tn_):  # double-buffered feat + weight + out blocks, + bias
        return 2 * (tb_ * d_in * itemsize + tn_ * d_in * itemsize
                    + tb_ * tn_ * itemsize + tn_ * 4)

    budget = 24 << 20                      # conservative: fits v5e defaults & v7x (64 MiB)
    while p2_bytes(tb, tn) > budget and tb > 64:
        tb = max(64, ((tb // 2) // SUBLANE) * SUBLANE)
    vmem_limit = int(min(max(2 * p2_bytes(tb, tn), 16 << 20), 56 << 20))

    nbt = -(-n // tb)                      # batch tiles
    ndt = -(-d_out // tn)                  # d_out tiles

    # ---- pass 1: per-tile partial (sum, centered M2), fully parallel over batch tiles ---
    partials = pl.pallas_call(
        functools.partial(_stats_kernel, n_rows=n, block_rows=tb),
        out_shape=jax.ShapeDtypeStruct((nbt, 2, d_in), jnp.float32),
        grid_spec=pltpu.PrefetchScalarGridSpec(
            num_scalar_prefetch=0,
            grid=(nbt,),
            in_specs=[pl.BlockSpec((tb, d_in), lambda i: (i, 0))],
            out_specs=pl.BlockSpec((1, 2, d_in), lambda i: (i, 0, 0)),
        ),
        compiler_params=pltpu.CompilerParams(
            dimension_semantics=("parallel",),
            vmem_limit_bytes=vmem_limit),
    )(feat)

    # ---- wrapper combine (tiny, plain JAX): Chan's parallel variance + BN fold ---------
    counts = jnp.clip(n - jnp.arange(nbt) * tb, 1, tb).astype(jnp.float32)   # (nbt,)
    tile_sum = partials[:, 0, :]                                             # (nbt, D_in)
    tile_m2 = partials[:, 1, :]
    mean = jnp.sum(tile_sum, axis=0) / n
    tile_mean = tile_sum / counts[:, None]
    m2 = jnp.sum(tile_m2, axis=0) + jnp.sum(counts[:, None] * (tile_mean - mean) ** 2, axis=0)
    var = m2 / n                                                             # biased variance
    inv_std = jax.lax.rsqrt(var + jnp.float32(eps))
    scale = gamma.astype(jnp.float32) * inv_std
    shift = beta.astype(jnp.float32) - mean * scale

    w_f32 = weight.astype(jnp.float32)
    w_scaled = (w_f32 * scale[None, :]).astype(out_dtype)                    # (D_out, D_in)
    bias = jnp.dot(shift[None, :], w_f32.T,
                   precision=jax.lax.Precision.HIGHEST,
                   preferred_element_type=jnp.float32)                       # (1, D_out)

    # ---- pass 2: pure-MXU matmul with the folded weight; parallel over (batch, d_out) ---
    out = pl.pallas_call(
        functools.partial(_apply_kernel, precision=precision, activation=activation),
        out_shape=jax.ShapeDtypeStruct((n, d_out), out_dtype),
        grid_spec=pltpu.PrefetchScalarGridSpec(
            num_scalar_prefetch=0,
            grid=(nbt, ndt),
            in_specs=[
                pl.BlockSpec((tb, d_in), lambda i, j: (i, 0)),
                pl.BlockSpec((tn, d_in), lambda i, j: (j, 0)),
                pl.BlockSpec((1, tn), lambda i, j: (0, j)),
            ],
            out_specs=pl.BlockSpec((tb, tn), lambda i, j: (i, j)),
        ),
        compiler_params=pltpu.CompilerParams(
            dimension_semantics=("parallel", "parallel"),
            vmem_limit_bytes=vmem_limit),
    )(feat, w_scaled, bias)

    return out


def price_aware_reference(feat, gamma, beta, weight):
    mean = jnp.mean(feat, axis=0, keepdims=True)
    var = jnp.mean((feat - mean) ** 2, axis=0, keepdims=True)
    y = (feat - mean) / jnp.sqrt(var + BN_EPS) * gamma[None, :] + beta[None, :]
    return jnp.matmul(y, weight.T, precision=jax.lax.Precision.HIGHEST)


if __name__ == "__main__":
    key = jax.random.PRNGKey(0)
    k_feat, k_w, k_g, k_b = jax.random.split(key, 4)

    N, D_IN, D_OUT = 64, 32, 48

    feat = jax.random.normal(k_feat, (N, D_IN), dtype=jnp.float32)
    gamma = 1.0 + 0.1 * jax.random.normal(k_g, (D_IN,), dtype=jnp.float32)
    beta = 0.1 * jax.random.normal(k_b, (D_IN,), dtype=jnp.float32)
    bound = 1.0 / (D_IN ** 0.5)
    weight = jax.random.uniform(k_w, (D_OUT, D_IN), dtype=jnp.float32,
                                minval=-bound, maxval=bound)

    ref = price_aware_reference(feat, gamma, beta, weight)

    # Fast path (default MXU precision -> single bf16 pass for f32 inputs); small batch
    # tile so the demo exercises the multi-tile stats combine and boundary masking.
    out = price_aware_forward(feat, gamma, beta, weight, batch_tile=32)
    out = jax.block_until_ready(out)
    assert out.shape == (N, D_OUT)
    assert jnp.max(jnp.abs(out - ref)) < 5e-2, "mismatch vs reference (default precision)"

    # High-precision path for a tight numerical check against the f32 reference.
    out_hi = price_aware_forward(feat, gamma, beta, weight, batch_tile=32,
                                 precision=jax.lax.Precision.HIGHEST)
    out_hi = jax.block_until_ready(out_hi)
    assert jnp.max(jnp.abs(out_hi - ref)) < 1e-4, "mismatch vs reference (HIGHEST precision)"

    print("KERNEL_OK")
</pallas_src>

<mosaic_0001>
module attributes {stable_mosaic.version = 11 : i64} {
  func.func @_stats_kernel(%arg0: i32, %arg1: memref<32x32xf32, #tpu.memory_space<vmem>>, %arg2: memref<1x2x32xf32, #tpu.memory_space<vmem>>) attributes {dimension_semantics = [#tpu.dimension_semantics<parallel>], iteration_bounds = array<i64: 2>, scalar_prefetch = 0 : i64, scratch_operands = 0 : i64, tpu.core_type = #tpu.core_type<tc>, window_params = [{transform_indices = @transform_0, window_bounds = array<i64: 32, 32>}, {transform_indices = @transform_1, window_bounds = array<i64: 1, 2, 32>}]} {
    %c32_i32 = arith.constant 32 : i32
    %0 = arith.muli %arg0, %c32_i32 : i32
    %c64_i32 = arith.constant 64 : i32
    %1 = arith.subi %c64_i32, %0 : i32
    %2 = tpu.iota {dimensions = array<i32: 0>} : vector<32x32xi32>
    %3 = vector.broadcast %1 : i32 to vector<32x32xi32>
    %4 = arith.cmpi slt, %2, %3 : vector<32x32xi32>
    %c0 = arith.constant 0 : index
    %c0_0 = arith.constant 0 : index
    %5 = vector.load %arg1[%c0, %c0_0] : memref<32x32xf32, #tpu.memory_space<vmem>>, vector<32x32xf32>
    %cst = arith.constant 0.000000e+00 : f32
    %6 = vector.broadcast %cst : f32 to vector<32x32xf32>
    %7 = arith.select %4, %5, %6 : vector<32x32xi1>, vector<32x32xf32>
    %c32_i32_1 = arith.constant 32 : i32
    %8 = arith.minsi %1, %c32_i32_1 : i32
    %9 = arith.sitofp %8 : i32 to f32
    %cst_2 = arith.constant dense<0.000000e+00> : vector<32xf32>
    %10 = vector.multi_reduction <add>, %7, %cst_2 [0] : vector<32x32xf32> to vector<32xf32>
    %11 = vector.shape_cast %10 : vector<32xf32> to vector<1x32xf32>
    %cst_3 = arith.constant 1.000000e+00 : f32
    %12 = arith.divf %cst_3, %9 : f32
    %13 = vector.broadcast %12 : f32 to vector<1x32xf32>
    %14 = arith.mulf %11, %13 : vector<1x32xf32>
    %15 = vector.broadcast %14 : vector<1x32xf32> to vector<32x32xf32>
    %16 = arith.subf %7, %15 : vector<32x32xf32>
    %cst_4 = arith.constant 0.000000e+00 : f32
    %17 = vector.broadcast %cst_4 : f32 to vector<32x32xf32>
    %18 = arith.select %4, %16, %17 : vector<32x32xi1>, vector<32x32xf32>
    %19 = arith.mulf %18, %18 : vector<32x32xf32>
    %cst_5 = arith.constant dense<0.000000e+00> : vector<32xf32>
    %20 = vector.multi_reduction <add>, %19, %cst_5 [0] : vector<32x32xf32> to vector<32xf32>
    %21 = vector.shape_cast %20 : vector<32xf32> to vector<1x32xf32>
    %22 = tpu.concatenate %11, %21 in 0 : vector<1x32xf32>, vector<1x32xf32> -> vector<2x32xf32>
    %23 = vector.shape_cast %22 : vector<2x32xf32> to vector<1x2x32xf32>
    %c0_6 = arith.constant 0 : index
    %c0_7 = arith.constant 0 : index
    %c0_8 = arith.constant 0 : index
    %24 = vector.load %arg2[%c0_6, %c0_7, %c0_8] : memref<1x2x32xf32, #tpu.memory_space<vmem>>, vector<1x2x32xf32>
    tpu.vector_store %arg2[%c0_6, %c0_7, %c0_8], %23 {strides = array<i32>} : memref<1x2x32xf32, #tpu.memory_space<vmem>>, vector<1x2x32xf32>,
    return
  }
  func.func @transform_0(%arg0: i32) -> (i32, i32) {
    %c0_i32 = arith.constant 0 : i32
    %c0_i32_0 = arith.constant 0 : i32
    return %arg0, %c0_i32 : i32, i32
  }
  func.func @transform_1(%arg0: i32) -> (i32, i32, i32) {
    %c0_i32 = arith.constant 0 : i32
    %c0_i32_0 = arith.constant 0 : i32
    %c0_i32_1 = arith.constant 0 : i32
    return %arg0, %c0_i32, %c0_i32_0 : i32, i32, i32
  }
}

</mosaic_0001>

<llo_original>
// kernel: tpu_custom_call.1
$region0: #{tpu_custom_call.1}
  #allocation0 [shape = 'u32[]', space=smem, size = 0x4, offset = 0x4, fixed_abs, tag = 'smem constant byte address 0x4 - core index']
  #allocation1 [shape = 'u32[144,128]{1,0:T(1,128)}', space=vmem, size = 0x12000, scoped, tag = 'internal scratch']
  %s0 = inlined_call_operand.vmem [shape: f32[64,32], index: 0, kind: input, shape index: {}]
  %s1 = inlined_call_operand.hbm [shape: f32[2,2,32], index: 1, kind: output, shape index: {}]
  %s2 = sld [smem:[#allocation0]]
  $region37: #{tpu_custom_call.1} parent=0
    _
  %s4 = ssub.s32 1, %s2
  %s5 = scalar_select 0, %s4, %s2
  $region1: #{tpu_custom_call.1} parent=0
    #allocation2 [shape = 'u8[2048]{0}', space=vmem, size = 0x800, scoped, tag = 'output window, operand 0']
    #allocation3 [shape = 's32[2]{0}', space=sflag, size = 0x8, scoped, tag = 'scoped memory for tpu_custom_call.1']
    %6 = vsyncpa [#allocation3], 0
    %s7 = scalar_lea.sflag [#allocation3], 1
    %8 = vsyncpa %s7, 0
    loop: start=0, step=1, limit=4
    $region2: #{tpu_custom_call.1} parent=1 // loop_pre_header
      _
    $region3: #{tpu_custom_call.1} parent=1 // loop_header
      %s10 = sphi 0, %s14
      %p11 = scmp.ge.s32.totalorder %s10, 4
      %s20 = sphi 0, %s22
      %s23 = sphi 0, %s20
      %s24 = sphi 0, %s23
      %s40 = sphi 0, %s24
      %s46 = sphi 0, %s48
      %s49 = sphi 0, %s46
      %s50 = sphi 0, %s49
      %s66 = sphi 0, %s50
    $region4: #{tpu_custom_call.1} parent=1 // loop_header_branch
      %13 = sbr.rel (%p11) target = $region8
    $region5: #{tpu_custom_call.1} parent=1 // loop_body
      %s15 = ssub.s32 %s10, 1
      %s16 = ssub.s32 %s10, 2
      %s17 = sadd.s32 %s10, 1
      %s18 = ssub.s32 %s10, %s17
      %p19 = scmp.eq.s32.totalorder %s18, 0
      %s21 = sadd.s32 %s20, 1
      %s22 = scalar_select %p19, %s20, %s21
      %p25 = pneg %p19
      %p26 = scmp.eq.s32.totalorder %s10, 1
      %p27 = por %p25, %p26
      %p28 = scmp.ne.s32.totalorder %s20, %s23
      %p29 = scmp.eq.s32.totalorder %s10, 0
      %p30 = por %p28, %p29
      %p31 = scmp.ne.s32.totalorder %s20, %s23
      %p32 = scmp.eq.s32.totalorder %s15, 1
      %p33 = por %p31, %p32
      %p34 = scmp.ne.s32.totalorder %s23, %s24
      %p35 = scmp.eq.s32.totalorder %s15, 0
      %p36 = por %p34, %p35
      %p37 = scmp.ne.s32.totalorder %s23, %s24
      %p38 = scmp.eq.s32.totalorder %s16, 1
      %p39 = por %p37, %p38
      %p41 = scmp.ne.s32.totalorder %s24, %s40
      %p42 = scmp.eq.s32.totalorder %s16, 0
      %p43 = por %p41, %p42
      %s44 = ssub.s32 %s10, %s17
      %p45 = scmp.eq.s32.totalorder %s44, 0
      %s47 = sadd.s32 %s46, 1
      %s48 = scalar_select %p45, %s46, %s47
      %p51 = pneg %p45
      %p52 = scmp.eq.s32.totalorder %s10, 1
      %p53 = por %p51, %p52
      %p54 = scmp.ne.s32.totalorder %s46, %s49
      %p55 = scmp.eq.s32.totalorder %s10, 0
      %p56 = por %p54, %p55
      %p57 = scmp.ne.s32.totalorder %s46, %s49
      %p58 = scmp.eq.s32.totalorder %s15, 1
      %p59 = por %p57, %p58
      %p60 = scmp.ne.s32.totalorder %s49, %s50
      %p61 = scmp.eq.s32.totalorder %s15, 0
      %p62 = por %p60, %p61
      %p63 = scmp.ne.s32.totalorder %s49, %s50
      %p64 = scmp.eq.s32.totalorder %s16, 1
      %p65 = por %p63, %p64
      %p67 = scmp.ne.s32.totalorder %s50, %s66
      %p68 = scmp.eq.s32.totalorder %s16, 0
      %p69 = por %p67, %p68
      %p70 = scmp.le.s32.totalorder 1, %s10
      %p71 = scmp.lt.s32.totalorder %s10, 3
      %p72 = pnand %p70, %p71
      %p73 = pneg %p72
      // Predicated region
      $region9: #{tpu_custom_call.1} parent=5 // pred_check
        _
      $region10: #{tpu_custom_call.1} parent=5 // pred_check_branch
        %75 = sbr.rel (%p72) target = $region12
      $region11: #{tpu_custom_call.1} parent=5 // pred_region
        %s76 = ssub.s32 %s10, 1
      $region12: #{tpu_custom_call.1} parent=5 // pred_fallthru
        _
      %p77 = scmp.lt.s32.totalorder %s10, 2
      // Predicated region
      $region13: #{tpu_custom_call.1} parent=5 // pred_check
        %p78 = pneg %p77
      $region14: #{tpu_custom_call.1} parent=5 // pred_check_branch
        %80 = sbr.rel (%p78) target = $region16
      $region15: #{tpu_custom_call.1} parent=5 // pred_region
        // Predicated region
        $region17: #{tpu_custom_call.1} parent=15 // pred_check
          %p81 = pneg %p30
        $region18: #{tpu_custom_call.1} parent=15 // pred_check_branch
          %83 = sbr.rel (%p81) target = $region20
        $region19: #{tpu_custom_call.1} parent=15 // pred_region
          %s84 = smul.u32 4, %s10
          %p85 = scmp.lt.s32.totalorder %s84, 7
          %s86 = scalar_select %p85, %s84, 7
          %s87 = smul.addr %s86, 8
          %s88 = scalar_lea.vmem %s0, %s87
          %s89 = smul.u32 4, %s10
        $region20: #{tpu_custom_call.1} parent=15 // pred_fallthru
          _
      $region16: #{tpu_custom_call.1} parent=5 // pred_fallthru
        _
      %p90 = scmp.le.s32.totalorder 1, %s10
      %p91 = scmp.lt.s32.totalorder %s10, 3
      %p92 = pnand %p90, %p91
      %p93 = pneg %p92
      // Predicated region
      $region21: #{tpu_custom_call.1} parent=5 // pred_check
        _
      $region22: #{tpu_custom_call.1} parent=5 // pred_check_branch
        %95 = sbr.rel (%p92) target = $region24
      $region23: #{tpu_custom_call.1} parent=5 // pred_region
        %s96 = ssub.s32 %s10, 1
        %s97 = smul.u32 4, %s15
        %p98 = scmp.lt.s32.totalorder %s97, 7
        %s99 = scalar_select %p98, %s97, 7
        %s100 = smul.addr %s99, 8
        %s101 = scalar_lea.vmem %s0, %s100
        %p102 = pneg %p36
        %p103 = pneg %p33
        %p104 = pneg %p62
        %p105 = pneg %p59
        %s106 = sand.u32 %s49, 1
        %s107 = scalar_lea.sflag [#allocation3], %s106
        %s108 = sand.u32 %s49, 1
        %s109 = smul.addr %s108, 2
        %s110 = scalar_lea.vmem [#allocation2], %s109
        %s111 = smul.u32 4, %s15
        %p112 = scmp.lt.s32.totalorder %s111, 7
        %s113 = scalar_select %p112, %s111, 7
        %s114 = smul.addr %s113, 8
        %s115 = scalar_lea.vmem %s0, %s114
        %s116 = smul.u32 4, %s15
        %s117 = smul.u32 %s15, 32
        %s118 = ssub.s32 64, %s117
        %v119 = vlaneseq
        %v120 = vshrl.u32 %v119, 7
        %v121 = vadd.s32 %v120, 8
        %v122 = vadd.s32 %v120, 16
        %v123 = vadd.s32 %v120, 24
        %v124 = vstv %s118
        %vm125 = vcmp.lt.s32.totalorder %v120, %v124
        %vm126 = vcmp.lt.s32.totalorder %v121, %v124
        %vm127 = vcmp.lt.s32.totalorder %v122, %v124
        %vm128 = vcmp.lt.s32.totalorder %v123, %v124
        %v129 = vld [vmem:[%s115] sm:$0xff]
        %v130 = vld [vmem:[%s115 + $0x8] sm:$0xff]
        %v131 = vld [vmem:[%s115 + $0x10] sm:$0xff]
        %v132 = vld [vmem:[%s115 + $0x18] sm:$0xff]
        %v133 = vsel %vm125, %v129, 0.0
        %v134 = vsel %vm126, %v130, 0.0
        %v135 = vsel %vm127, %v131, 0.0
        %v136 = vsel %vm128, %v132, 0.0
        %p137 = scmp.lt.s32.totalorder %s118, 32
        %s138 = scalar_select %p137, %s118, 32
        %s139 = scvt.s32.f32 %s138
        %vm140 = vcmask 261120
        %v141 = vsel %vm140, %v133, 0.0
        %v142 = vsel %vm140, %v134, 0.0
        %v143 = vadd.f32 %v141, %v142
        %v144 = vsel %vm140, %v135, 0.0
        %v145 = vadd.f32 %v143, %v144
        %v146 = vsel %vm140, %v136, 0.0
        %v147 = vadd.f32 %v145, %v146
        %v148 = vrot.slane %v147, 4
        %v149 = vadd.f32 %v147, %v148
        %v150 = vrot.slane %v149, 2
        %v151 = vadd.f32 %v149, %v150
        %v152 = vrot.slane %v151, 1
        %v153 = vadd.f32 %v151, %v152
        %v154 = vstv %s139
        %v155 = vrcp.pop %v154
        %s156 = vtos %v155
        %v157 = vstv %s156
        %v158 = vmul.f32 %v153, %v157
        %v159 = vsub.f32 %v133, %v158
        %v160 = vsub.f32 %v134, %v158
        %v161 = vsub.f32 %v135, %v158
        %v162 = vsub.f32 %v136, %v158
        %v163 = vsel %vm125, %v159, 0.0
        %v164 = vsel %vm126, %v160, 0.0
        %v165 = vsel %vm127, %v161, 0.0
        %v166 = vsel %vm128, %v162, 0.0
        %v167 = vmul.f32 %v163, %v163
        %v168 = vmul.f32 %v164, %v164
        %v169 = vmul.f32 %v165, %v165
        %v170 = vmul.f32 %v166, %v166
        %v171 = vsel %vm140, %v167, 0.0
        %v172 = vsel %vm140, %v168, 0.0
        %v173 = vadd.f32 %v171, %v172
        %v174 = vsel %vm140, %v169, 0.0
        %v175 = vadd.f32 %v173, %v174
        %v176 = vsel %vm140, %v170, 0.0
        %v177 = vadd.f32 %v175, %v176
        %v178 = vrot.slane %v177, 4
        %v179 = vadd.f32 %v177, %v178
        %v180 = vrot.slane %v179, 2
        %v181 = vadd.f32 %v179, %v180
        %v182 = vrot.slane %v181, 1
        %v183 = vadd.f32 %v181, %v182
        %vm184 = vcmask 1040384
        %v185 = vsel %vm184, %v153, %v183
        %vm186 = vcmask 254976
        %187 = vst.msk [vmem:[%s110] sm:$0x3] %vm186, %v185
        %s188 = sand.u32 %s49, 1
        %s189 = scalar_lea.sflag [#allocation3], %s188
        %s190 = sand.u32 %s49, 1
        %s191 = smul.addr %s190, 2
        %s192 = scalar_lea.vmem [#allocation2], %s191
        // Predicated region
        $region25: #{tpu_custom_call.1} parent=23 // pred_check
          %p193 = pneg %p59
        $region26: #{tpu_custom_call.1} parent=23 // pred_check_branch
          %195 = sbr.rel (%p193) target = $region28
        $region27: #{tpu_custom_call.1} parent=23 // pred_region
          %s197 = ssub.s32 32, 32
          %198 = vsyncadd %s189, %s197
          %s199 = smul.addr %s15, 32
          %s200 = scalar_lea.hbm %s1, %s199
          %s202 = sshll.u32 %s192, 4
          %s203 = int_to_ptr.vmem [resolvable:$true] %s202
          %205 = dma.vmem_to_hbm [thread:$0]  %s203, 32, %s200, %s189
        $region28: #{tpu_custom_call.1} parent=23 // pred_fallthru
          _
      $region24: #{tpu_custom_call.1} parent=5 // pred_fallthru
        _
      %p206 = scmp.le.s32.totalorder 2, %s10
      // Predicated region
      $region29: #{tpu_custom_call.1} parent=5 // pred_check
        %p207 = pneg %p206
      $region30: #{tpu_custom_call.1} parent=5 // pred_check_branch
        %209 = sbr.rel (%p207) target = $region32
      $region31: #{tpu_custom_call.1} parent=5 // pred_region
        %s210 = ssub.s32 %s10, 2
        // Predicated region
        $region33: #{tpu_custom_call.1} parent=31 // pred_check
          %p211 = pneg %p65
        $region34: #{tpu_custom_call.1} parent=31 // pred_check_branch
          %213 = sbr.rel (%p211) target = $region36
        $region35: #{tpu_custom_call.1} parent=31 // pred_region
          %s214 = sand.u32 %s50, 1
          %s215 = scalar_lea.sflag [#allocation3], %s214
          %s216 = sand.u32 %s50, 1
          %s217 = smul.addr %s216, 2
          %s218 = scalar_lea.vmem [#allocation2], %s217
          %219 = dma.done %s215, 32
        $region36: #{tpu_custom_call.1} parent=31 // pred_fallthru
          _
      $region32: #{tpu_custom_call.1} parent=5 // pred_fallthru
        _
    $region6: #{tpu_custom_call.1} parent=1 // loop_footer
      %s14 = sadd.s32 1, %s10
    $region7: #{tpu_custom_call.1} parent=1 // loop_footer_branch
      %9 = sbr.rel target = $region3
    $region8: #{tpu_custom_call.1} parent=1 // loop_exit
      _
    %220 = vsyncpa [#allocation3], 1
    %s221 = scalar_lea.sflag [#allocation3], 1
    %222 = vsyncpa %s221, 1

</llo_original>
